<compile_context>
chip_gen: v7x
topology: tpu7x:2x2x1
jax: 0.10.0
libtpu: 0.0.40
codegen_flags: <defaults>
</compile_context>

<pallas_src>
import functools

import jax
import jax.numpy as jnp
from jax import lax
from jax.experimental import pallas as pl
from jax.experimental.pallas import tpu as pltpu

LAMBDA_C = 0.01
_VMEM_TILE_BUDGET = 24 << 20     # target bytes for the double-buffered input tiles
_VMEM_LIMIT = 32 << 20           # scoped-VMEM limit safe on v5e / v6e / v7x
_MAX_B_TILE = 512


def _combined_loss_kernel(logits_ref,   # VMEM (Bt, C) f32
                          labels_ref,   # VMEM (Bt, 1) i32
                          feats_ref,    # VMEM (Bt, D) f32
                          cent_ref,     # VMEM (Bt, D) f32  (pre-gathered centers[labels])
                          out_ref,      # SMEM (1, 2) f32: [ce_sum, cl_sum] for this tile
                          *, b_actual, b_tile):
    base = pl.program_id(0) * b_tile

    logits = logits_ref[...]                                   # (Bt, C)
    labels = labels_ref[...]                                   # (Bt, 1)
    bt, c = logits.shape

    # Row validity mask (handles the ragged last batch tile; where-masking so
    # NaN/Inf garbage in out-of-bounds rows cannot leak into the sums).
    row_ids = lax.broadcasted_iota(jnp.int32, (bt, 1), 0) + base
    valid = row_ids < b_actual                                 # (Bt, 1) bool

    # ---- row-wise logsumexp over the whole tile (VPU + EUP + one XLU reduce) ----
    m = jnp.max(logits, axis=-1, keepdims=True)                # (Bt, 1)
    lse = m + jnp.log(jnp.sum(jnp.exp(logits - m), axis=-1, keepdims=True))

    # ---- target logit per row: tile-wide select, reusing the loaded logits ----
    class_iota = lax.broadcasted_iota(jnp.int32, (bt, c), 1)   # (Bt, C)
    tgt = jnp.sum(jnp.where(class_iota == labels, logits, 0.0),
                  axis=-1, keepdims=True)                      # (Bt, 1)

    ce_rows = jnp.where(valid, lse - tgt, 0.0)                 # (Bt, 1)

    # ---- center loss: pure streaming VPU work on pre-gathered centers ----
    diff = feats_ref[...] - cent_ref[...]                      # (Bt, D)
    dist = jnp.clip(jnp.sum(diff * diff, axis=-1, keepdims=True), 1e-12, 1e12)
    cl_rows = jnp.where(valid, dist, 0.0)                      # (Bt, 1)

    out_ref[0, 0] = jnp.sum(ce_rows)
    out_ref[0, 1] = jnp.sum(cl_rows)


def _round_up(x, m):
    return (x + m - 1) // m * m


def _pick_b_tile(B, C, D):
    # Per batch row, double-buffered f32/i32: logits (C) + features (D) +
    # gathered centers (D) + label (1).
    per_row_bytes = 2 * 4 * (C + 2 * D + 1)
    fit = max(8, _VMEM_TILE_BUDGET // per_row_bytes)
    b_tile = int(min(_MAX_B_TILE, fit, _round_up(B, 8)))
    return max(8, (b_tile // 8) * 8)


def combined_loss(outputs, features, labels, centers, lambda_c=LAMBDA_C, b_tile=None):
    B, C = outputs.shape
    D = features.shape[1]
    assert centers.shape == (C, D)
    assert labels.shape == (B,)

    if b_tile is None:
        b_tile = _pick_b_tile(B, C, D)
    num_tiles = pl.cdiv(B, b_tile)

    logits = outputs.astype(jnp.float32)
    feats = features.astype(jnp.float32)
    labels_i = labels.astype(jnp.int32)
    labels_col = labels_i.reshape(B, 1)
    cent_g = jnp.take(centers.astype(jnp.float32), labels_i, axis=0)   # (B, D)

    kernel = functools.partial(_combined_loss_kernel, b_actual=B, b_tile=b_tile)

    cost = pl.CostEstimate(
        flops=5 * B * C + 6 * B * D,
        transcendentals=B * C + B,
        bytes_accessed=4 * (B * C + 2 * B * D + B) + 8 * num_tiles,
    )

    partials = pl.pallas_call(
        kernel,
        out_shape=jax.ShapeDtypeStruct((num_tiles, 2), jnp.float32),
        grid_spec=pl.GridSpec(
            grid=(num_tiles,),
            in_specs=[
                pl.BlockSpec((b_tile, C), lambda i: (i, 0)),   # logits tile
                pl.BlockSpec((b_tile, 1), lambda i: (i, 0)),   # label column
                pl.BlockSpec((b_tile, D), lambda i: (i, 0)),   # features tile
                pl.BlockSpec((b_tile, D), lambda i: (i, 0)),   # gathered centers tile
            ],
            out_specs=pl.BlockSpec((1, 2), lambda i: (i, 0),
                                   memory_space=pltpu.SMEM),
        ),
        compiler_params=pltpu.CompilerParams(
            dimension_semantics=("parallel",),                 # batch tiles shard across TCs
            vmem_limit_bytes=_VMEM_LIMIT,
        ),
        cost_estimate=cost,
    )(logits, labels_col, feats, cent_g)

    ce = jnp.sum(partials[:, 0]) / jnp.float32(B)
    cl = jnp.sum(partials[:, 1]) / jnp.float32(B)
    return ce + jnp.float32(lambda_c) * cl


def _reference(outputs, features, labels, centers, lambda_c=LAMBDA_C):
    # Pure-JAX reference of the same math, for a sanity check.
    lse = jax.nn.logsumexp(outputs, axis=-1)
    target = jnp.take_along_axis(outputs, labels[:, None], axis=-1)[:, 0]
    ce = jnp.mean(lse - target)
    sel = centers[labels]
    dist = jnp.clip(jnp.sum((features - sel) ** 2, axis=-1), 1e-12, 1e12)
    cl = jnp.sum(dist) / outputs.shape[0]
    return ce + lambda_c * cl


if __name__ == "__main__":
    B, NUM_CLASSES, FEAT_DIM = 8, 16, 32

    key = jax.random.PRNGKey(0)
    k_out, k_feat, k_lab, k_cent = jax.random.split(key, 4)

    outputs = jax.random.normal(k_out, (B, NUM_CLASSES), dtype=jnp.float32)
    features = jax.random.normal(k_feat, (B, FEAT_DIM), dtype=jnp.float32)
    labels = jax.random.randint(k_lab, (B,), 0, NUM_CLASSES, dtype=jnp.int32)
    # CenterLoss parameter (torch.randn(num_classes, feat_dim) analogue), deterministic init.
    centers = jax.random.normal(k_cent, (NUM_CLASSES, FEAT_DIM), dtype=jnp.float32)

    loss = combined_loss(outputs, features, labels, centers)
    jax.block_until_ready(loss)

    ref = _reference(outputs, features, labels, centers)
    assert jnp.allclose(loss, ref, rtol=1e-5, atol=1e-5), (loss, ref)

    print("KERNEL_OK")
</pallas_src>

<mosaic_0001>
module attributes {stable_mosaic.version = 11 : i64} {
  func.func @_combined_loss_kernel(%arg0: i32, %arg1: memref<8x16xf32, #tpu.memory_space<vmem>>, %arg2: memref<8x1xi32, #tpu.memory_space<vmem>>, %arg3: memref<8x32xf32, #tpu.memory_space<vmem>>, %arg4: memref<8x32xf32, #tpu.memory_space<vmem>>, %arg5: memref<1x2xf32, #tpu.memory_space<smem>>) attributes {dimension_semantics = [#tpu.dimension_semantics<parallel>], iteration_bounds = array<i64: 1>, scalar_prefetch = 0 : i64, scratch_operands = 0 : i64, tpu.core_type = #tpu.core_type<tc>, window_params = [{transform_indices = @transform_0, window_bounds = array<i64: 8, 16>}, {transform_indices = @transform_1, window_bounds = array<i64: 8, 1>}, {transform_indices = @transform_2, window_bounds = array<i64: 8, 32>}, {transform_indices = @transform_3, window_bounds = array<i64: 8, 32>}, {transform_indices = @transform_4, window_bounds = array<i64: 1, 2>}]} {
    %c8_i32 = arith.constant 8 : i32
    %0 = arith.muli %arg0, %c8_i32 : i32
    %c0 = arith.constant 0 : index
    %c0_0 = arith.constant 0 : index
    %1 = vector.load %arg1[%c0, %c0_0] : memref<8x16xf32, #tpu.memory_space<vmem>>, vector<8x16xf32>
    %c0_1 = arith.constant 0 : index
    %c0_2 = arith.constant 0 : index
    %2 = vector.load %arg2[%c0_1, %c0_2] : memref<8x1xi32, #tpu.memory_space<vmem>>, vector<8x1xi32>
    %3 = tpu.iota {dimensions = array<i32: 0>} : vector<8x1xi32>
    %4 = vector.broadcast %0 : i32 to vector<8x1xi32>
    %5 = arith.addi %3, %4 : vector<8x1xi32>
    %c8_i32_3 = arith.constant 8 : i32
    %6 = vector.broadcast %c8_i32_3 : i32 to vector<8x1xi32>
    %7 = arith.cmpi slt, %5, %6 : vector<8x1xi32>
    %cst = arith.constant dense<0xFF800000> : vector<8xf32>
    %8 = vector.multi_reduction <maximumf>, %1, %cst [1] : vector<8x16xf32> to vector<8xf32>
    %9 = vector.shape_cast %8 : vector<8xf32> to vector<8x1xf32>
    %10 = vector.broadcast %9 : vector<8x1xf32> to vector<8x16xf32>
    %11 = arith.subf %1, %10 : vector<8x16xf32>
    %12 = math.exp %11 : vector<8x16xf32>
    %cst_4 = arith.constant dense<0.000000e+00> : vector<8xf32>
    %13 = vector.multi_reduction <add>, %12, %cst_4 [1] : vector<8x16xf32> to vector<8xf32>
    %14 = vector.shape_cast %13 : vector<8xf32> to vector<8x1xf32>
    %15 = math.log %14 : vector<8x1xf32>
    %16 = arith.addf %9, %15 : vector<8x1xf32>
    %17 = tpu.iota {dimensions = array<i32: 1>} : vector<8x16xi32>
    %18 = vector.broadcast %2 : vector<8x1xi32> to vector<8x16xi32>
    %19 = arith.cmpi eq, %17, %18 : vector<8x16xi32>
    %cst_5 = arith.constant 0.000000e+00 : f32
    %20 = vector.broadcast %cst_5 : f32 to vector<8x16xf32>
    %21 = arith.select %19, %1, %20 : vector<8x16xi1>, vector<8x16xf32>
    %cst_6 = arith.constant dense<0.000000e+00> : vector<8xf32>
    %22 = vector.multi_reduction <add>, %21, %cst_6 [1] : vector<8x16xf32> to vector<8xf32>
    %23 = vector.shape_cast %22 : vector<8xf32> to vector<8x1xf32>
    %24 = arith.subf %16, %23 : vector<8x1xf32>
    %cst_7 = arith.constant 0.000000e+00 : f32
    %25 = vector.broadcast %cst_7 : f32 to vector<8x1xf32>
    %26 = arith.select %7, %24, %25 : vector<8x1xi1>, vector<8x1xf32>
    %c0_8 = arith.constant 0 : index
    %c0_9 = arith.constant 0 : index
    %27 = vector.load %arg3[%c0_8, %c0_9] : memref<8x32xf32, #tpu.memory_space<vmem>>, vector<8x32xf32>
    %c0_10 = arith.constant 0 : index
    %c0_11 = arith.constant 0 : index
    %28 = vector.load %arg4[%c0_10, %c0_11] : memref<8x32xf32, #tpu.memory_space<vmem>>, vector<8x32xf32>
    %29 = arith.subf %27, %28 : vector<8x32xf32>
    %30 = arith.mulf %29, %29 : vector<8x32xf32>
    %cst_12 = arith.constant dense<0.000000e+00> : vector<8xf32>
    %31 = vector.multi_reduction <add>, %30, %cst_12 [1] : vector<8x32xf32> to vector<8xf32>
    %32 = vector.shape_cast %31 : vector<8xf32> to vector<8x1xf32>
    %cst_13 = arith.constant 9.99999996E-13 : f32
    %cst_14 = arith.constant 9.99999995E+11 : f32
    %33 = vector.broadcast %cst_13 : f32 to vector<8x1xf32>
    %34 = arith.maximumf %33, %32 : vector<8x1xf32>
    %35 = vector.broadcast %cst_14 : f32 to vector<8x1xf32>
    %36 = arith.minimumf %35, %34 : vector<8x1xf32>
    %cst_15 = arith.constant 0.000000e+00 : f32
    %37 = vector.broadcast %cst_15 : f32 to vector<8x1xf32>
    %38 = arith.select %7, %36, %37 : vector<8x1xi1>, vector<8x1xf32>
    %39 = vector.shape_cast %26 : vector<8x1xf32> to vector<1x8x1xf32>
    %cst_16 = arith.constant dense<0.000000e+00> : vector<1xf32>
    %40 = vector.multi_reduction <add>, %39, %cst_16 [1, 2] : vector<1x8x1xf32> to vector<1xf32>
    %41 = vector.shape_cast %40 : vector<1xf32> to vector<1x1x1xf32>
    %42 = vector.extract %41[0, 0, 0] : f32 from vector<1x1x1xf32>
    %c0_17 = arith.constant 0 : index
    %c0_18 = arith.constant 0 : index
    %43 = memref.load %arg5[%c0_17, %c0_18] : memref<1x2xf32, #tpu.memory_space<smem>>
    memref.store %42, %arg5[%c0_17, %c0_18] : memref<1x2xf32, #tpu.memory_space<smem>>
    %44 = vector.shape_cast %38 : vector<8x1xf32> to vector<1x8x1xf32>
    %cst_19 = arith.constant dense<0.000000e+00> : vector<1xf32>
    %45 = vector.multi_reduction <add>, %44, %cst_19 [1, 2] : vector<1x8x1xf32> to vector<1xf32>
    %46 = vector.shape_cast %45 : vector<1xf32> to vector<1x1x1xf32>
    %47 = vector.extract %46[0, 0, 0] : f32 from vector<1x1x1xf32>
    %c0_20 = arith.constant 0 : index
    %c1 = arith.constant 1 : index
    %48 = memref.load %arg5[%c0_20, %c1] : memref<1x2xf32, #tpu.memory_space<smem>>
    memref.store %47, %arg5[%c0_20, %c1] : memref<1x2xf32, #tpu.memory_space<smem>>
    return
  }
  func.func @transform_0(%arg0: i32) -> (i32, i32) {
    %c0_i32 = arith.constant 0 : i32
    %c0_i32_0 = arith.constant 0 : i32
    return %arg0, %c0_i32 : i32, i32
  }
  func.func @transform_1(%arg0: i32) -> (i32, i32) {
    %c0_i32 = arith.constant 0 : i32
    %c0_i32_0 = arith.constant 0 : i32
    return %arg0, %c0_i32 : i32, i32
  }
  func.func @transform_2(%arg0: i32) -> (i32, i32) {
    %c0_i32 = arith.constant 0 : i32
    %c0_i32_0 = arith.constant 0 : i32
    return %arg0, %c0_i32 : i32, i32
  }
  func.func @transform_3(%arg0: i32) -> (i32, i32) {
    %c0_i32 = arith.constant 0 : i32
    %c0_i32_0 = arith.constant 0 : i32
    return %arg0, %c0_i32 : i32, i32
  }
  func.func @transform_4(%arg0: i32) -> (i32, i32) {
    %c0_i32 = arith.constant 0 : i32
    %c0_i32_0 = arith.constant 0 : i32
    return %arg0, %c0_i32 : i32, i32
  }
}

</mosaic_0001>

<llo_original>
// kernel: tpu_custom_call.1
$region0: #{tpu_custom_call.1}
  #allocation0 [shape = 'u32[]', space=smem, size = 0x4, offset = 0x4, fixed_abs, tag = 'smem constant byte address 0x4 - core index']
  #allocation1 [shape = 'u32[144,128]{1,0:T(1,128)}', space=vmem, size = 0x12000, scoped, tag = 'internal scratch']
  %s0 = inlined_call_operand.vmem [shape: f32[8,16], index: 0, kind: input, shape index: {}]
  %s1 = inlined_call_operand.vmem [shape: s32[8,1], index: 1, kind: input, shape index: {}]
  %s2 = inlined_call_operand.vmem [shape: f32[8,32], index: 2, kind: input, shape index: {}]
  %s3 = inlined_call_operand.hbm [shape: f32[8,32], index: 3, kind: input, shape index: {}]
  %s4 = inlined_call_operand.hbm [shape: f32[1,2], index: 4, kind: output, shape index: {}]
  %s5 = sld [smem:[#allocation0]]
  $region30: #{tpu_custom_call.1} parent=0
    _
  %s7 = ssub.s32 1, %s5
  %s8 = scalar_select 0, %s7, %s5
  $region1: #{tpu_custom_call.1} parent=0
    #allocation2 [shape = 'u8[4096]{0}', space=vmem, size = 0x1000, scoped, tag = 'input window, operand 3, single buffered']
    #allocation3 [shape = 's32[1]{0}', space=sflag, size = 0x4, scoped, tag = 'scoped memory for tpu_custom_call.1']
    #allocation4 [shape = 's32[1]{0}', space=sflag, size = 0x4, scoped, tag = 'scoped memory for tpu_custom_call.1']
    #allocation5 [shape = 'u8[512]{0}', space=smem, size = 0x200, scoped, tag = 'output window, operand 0, single buffered']
    %9 = vsyncpa [#allocation3], 0
    %10 = vsyncpa [#allocation4], 0
    // Predicated region
    $region2: #{tpu_custom_call.1} parent=1 // pred_check
      _
    $region3: #{tpu_custom_call.1} parent=1 // pred_check_branch
      %12 = sbr.rel (0) target = $region5
    $region4: #{tpu_custom_call.1} parent=1 // pred_region
      _
    $region5: #{tpu_custom_call.1} parent=1 // pred_fallthru
      _
    // Predicated region
    $region6: #{tpu_custom_call.1} parent=1 // pred_check
      _
    $region7: #{tpu_custom_call.1} parent=1 // pred_check_branch
      %14 = sbr.rel (0) target = $region9
    $region8: #{tpu_custom_call.1} parent=1 // pred_region
      _
    $region9: #{tpu_custom_call.1} parent=1 // pred_fallthru
      _
    // Predicated region
    $region10: #{tpu_custom_call.1} parent=1 // pred_check
      _
    $region11: #{tpu_custom_call.1} parent=1 // pred_check_branch
      %16 = sbr.rel (0) target = $region13
    $region12: #{tpu_custom_call.1} parent=1 // pred_region
      _
    $region13: #{tpu_custom_call.1} parent=1 // pred_fallthru
      _
    // Predicated region
    $region14: #{tpu_custom_call.1} parent=1 // pred_check
      _
    $region15: #{tpu_custom_call.1} parent=1 // pred_check_branch
      %18 = sbr.rel (0) target = $region17
    $region16: #{tpu_custom_call.1} parent=1 // pred_region
      %s20 = ssub.s32 128, 128
      %21 = vsyncadd [#allocation3], %s20
      %s23 = sshll.u32 [#allocation2], 4
      %s24 = int_to_ptr.vmem [resolvable:$true] %s23
      %26 = dma.hbm_to_vmem [thread:$0]  %s3, 128, %s24, [#allocation3]
    $region17: #{tpu_custom_call.1} parent=1 // pred_fallthru
      _
    // Predicated region
    $region18: #{tpu_custom_call.1} parent=1 // pred_check
      _
    $region19: #{tpu_custom_call.1} parent=1 // pred_check_branch
      %28 = sbr.rel (0) target = $region21
    $region20: #{tpu_custom_call.1} parent=1 // pred_region
      %29 = dma.done [#allocation3], 128
    $region21: #{tpu_custom_call.1} parent=1 // pred_fallthru
      _
    %s30 = smul.u32 0, 8
    %v31 = vld [vmem:[%s0] sm:$0xff]
    %v32 = vld [vmem:[%s1] sm:$0xff]
    %v33 = vlaneseq
    %v34 = vshrl.u32 %v33, 7
    %v35 = vstv %s30
    %v36 = vadd.s32 %v34, %v35
    %vm37 = vcmp.lt.s32.totalorder %v36, 8
    %vm38 = vcmask 130048
    %v39 = vsel %vm38, %v31, -inf
    %40 = vmax.xlane.f32.xlu0 %v39
    %v41 = vpop.xlane.xlu0 %40
    %v42 = vsub.f32 %v31, %v41
    %v43 = vmul.f32 %v42, 1.442695
    %v44 = vpow.pop %v43
    %v45 = vsel %vm38, %v44, 0.0
    %46 = vadd.xlane.f32.xlu0 %v45
    %v47 = vpop.xlane.xlu0 %46
    %v48 = vlog2.pop %v47
    %v49 = vmul.f32 %v48, 0.6931472
    %v50 = vadd.f32 %v41, %v49
    %v51 = vlaneseq
    %v52 = vand.u32 %v51, 127
    %53 = vset.pattern.permute.xlu0 0
    %54 = vperm.xlu0 %53, %v32
    %v55 = vpop.permute.xlu0 %54
    %vm56 = vcmp.eq.s32.totalorder %v52, %v55
    %v57 = vsel %vm56, %v31, 0.0
    %v58 = vsel %vm38, %v57, 0.0
    %59 = vadd.xlane.f32.xlu0 %v58
    %v60 = vpop.xlane.xlu0 %59
    %v61 = vsub.f32 %v50, %v60
    %v62 = vsel %vm37, %v61, 0.0
    %v63 = vld [vmem:[%s2] sm:$0xff]
    %v64 = vld [vmem:[#allocation2] sm:$0xff]
    %v65 = vsub.f32 %v63, %v64
    %v66 = vmul.f32 %v65, %v65
    %vm67 = vcmask 261120
    %v68 = vsel %vm67, %v66, 0.0
    %69 = vadd.xlane.f32.xlu0 %v68
    %v70 = vpop.xlane.xlu0 %69
    %v71 = vmax.f32 %v70, 1e-12
    %v72 = vmin.f32 %v71, 1e+12
    %v73 = vsel %vm37, %v72, 0.0
    %vm74 = vcmask 7168
    %v75 = vsel %vm74, %v62, 0.0
    %76 = vadd.xlane.f32.xlu0 %v75
    %v77 = vpop.xlane.xlu0 %76
    %v78 = vrot.slane %v77, 4
    %v79 = vadd.f32 %v77, %v78
    %v80 = vrot.slane %v79, 2
    %v81 = vadd.f32 %v79, %v80
    %v82 = vrot.slane %v81, 1
    %v83 = vadd.f32 %v81, %v82
    %s84 = vtos %v83
    %s85 = scalar_lea.smem [#allocation5], 0
    %86 = sst [smem:[%s85]] %s84
    %v87 = vsel %vm74, %v73, 0.0
    %88 = vadd.xlane.f32.xlu0 %v87
    %v89 = vpop.xlane.xlu0 %88
    %v90 = vrot.slane %v89, 4
    %v91 = vadd.f32 %v89, %v90
    %v92 = vrot.slane %v91, 2
    %v93 = vadd.f32 %v91, %v92
    %v94 = vrot.slane %v93, 1
    %v95 = vadd.f32 %v93, %v94
    %s96 = vtos %v95
    %s97 = scalar_lea.smem [#allocation5], 1
    %98 = sst [smem:[%s97]] %s96
    // Predicated region
    $region22: #{tpu_custom_call.1} parent=1 // pred_check
      _
    $region23: #{tpu_custom_call.1} parent=1 // pred_check_branch
      %100 = sbr.rel (0) target = $region25
    $region24: #{tpu_custom_call.1} parent=1 // pred_region
      %s102 = ssub.s32 16, 16
      %103 = vsyncadd [#allocation4], %s102
      %106 = dma.smem_to_hbm [#allocation5], 16, %s4, [#allocation4]
    $region25: #{tpu_custom_call.1} parent=1 // pred_fallthru
      _
    // Predicated region
    $region26: #{tpu_custom_call.1} parent=1 // pred_check
      _
    $region27: #{tpu_custom_call.1} parent=1 // pred_check_branch
      %108 = sbr.rel (0) target = $region29
    $region28: #{tpu_custom_call.1} parent=1 // pred_region
      %109 = dma.done [#allocation4], 16
    $region29: #{tpu_custom_call.1} parent=1 // pred_fallthru
      _
    %110 = sfence
    %111 = vsyncpa [#allocation3], 1
    %112 = vsyncpa [#allocation4], 1

</llo_original>
